<compile_context>
chip_gen: v5e
topology: v5e:2x2
jax: 0.10.0
libtpu: 0.0.40
codegen_flags: <defaults>
</compile_context>

<pallas_src>
import functools

import jax
import jax.numpy as jnp
from jax import lax
from jax.experimental import pallas as pl
from jax.experimental.pallas import tpu as pltpu

_LANE = 128
_BITS_DTYPE = jnp.uint16
_BITS_ITEMSIZE = 2
_FALLBACK_VMEM_BYTES = 64 * 1024 * 1024  # v7x-safe if get_tpu_info() is unavailable


def _round_up(x, m):
    return ((x + m - 1) // m) * m


def _sublane(itemsize):
    # Packed sublane multiple: 8 rows (f32), 16 (bf16 / u16), 32 (i8).
    return max(8, 32 // max(int(itemsize), 1))


def _vmem_capacity_bytes():
    try:
        return int(pltpu.get_tpu_info().vmem_capacity_bytes)
    except Exception:
        return _FALLBACK_VMEM_BYTES


def _choose_tiles(n_rows, width, itemsize, vmem_budget):
    """Pick (tile_rows, tile_cols) so double-buffered in + out + lane-padded
    bits buffers stay inside `vmem_budget` bytes."""
    sub = max(_sublane(itemsize), _sublane(_BITS_ITEMSIZE))
    x_row = width * itemsize               # one row of x (and one row of out)
    bits_row = _LANE * _BITS_ITEMSIZE      # (tr, g<=128) bits block is lane-padded
    per_row = 2 * (2 * x_row + bits_row)   # 2 buffers each of {in, out, bits}

    if sub * per_row > vmem_budget:
        # Very wide hidden: add a column grid axis so a single block still fits.
        tr = sub
        raw = max(_LANE, (vmem_budget - 2 * tr * bits_row) // (4 * tr * itemsize))
        tc = max(_LANE, (raw // _LANE) * _LANE)
        if tc >= width:
            tc = width
        return tr, tc

    tc = width
    tr_max = vmem_budget // per_row
    if n_rows <= tr_max:
        if n_rows >= 2 * sub:
            # >= 2 grid steps so the "parallel" axis can use both v7x TensorCores.
            return _round_up(pl.cdiv(n_rows, 2), sub), tc
        return n_rows, tc
    return max(sub, (tr_max // sub) * sub), tc


def _dropword_kernel(thr_ref, bits_ref, x_ref, o_ref, *, group, hidden):
    # thr_ref: (1,) int32 scalar-prefetch (SMEM); bits_ref: (tr, group) uint16;
    # x_ref / o_ref: (tr, tc), with tc == group * hidden == 128 when group > 1.
    thr = thr_ref[0]
    keep = (bits_ref[...].astype(jnp.int32) >= thr).astype(x_ref.dtype)
    if group == 1:
        o_ref[...] = x_ref[...] * keep       # (tr, 1) broadcasts over lanes
        return
    rows, width = x_ref.shape                # width == group * hidden
    lane = lax.broadcasted_iota(jnp.int32, (rows, width), 1)
    full = jnp.broadcast_to(keep[:, group - 1:group], (rows, width))
    for j in range(group - 2, -1, -1):       # group - 1 elementwise selects
        full = jnp.where(lane < (j + 1) * hidden, keep[:, j:j + 1], full)
    o_ref[...] = x_ref[...] * full


def dropword(x, *, p, seed=0, training=True):
    """Pallas implementation of Dropword.forward.  x: (B, S, H)."""
    assert x.ndim == 3
    if not training or p is None or p <= 0.0:
        return x                              # eval path is identity
    if p >= 1.0:
        return jnp.zeros_like(x)              # exact p == 1 edge (no threshold bias)

    B, S, H = x.shape
    N = B * S
    itemsize = jnp.dtype(x.dtype).itemsize

    # Fold g tokens per 128-lane row when possible -> lane-dense output stores.
    group = 1
    if H < _LANE and _LANE % H == 0 and N % (_LANE // H) == 0:
        group = _LANE // H
    # TODO(synk): pad H to a multiple of 128 when H >= 128 has a ragged tail
    # (or H < 128 with 128 % H != 0) to avoid masked partial stores there too.
    n_rows = N // group
    width = H * group
    x2 = x.reshape(n_rows, width)

    # One uint16 of randomness per token (drawn wrapper-side: tiling-invariant
    # and portable).  Keep token t iff bits[t] >= round(p * 2^16) <=> Bern(1-p).
    bits = jax.random.bits(jax.random.PRNGKey(seed), (N,), dtype=_BITS_DTYPE)
    bits = bits.reshape(n_rows, group)
    threshold = jnp.array(
        [min(max(int(round(float(p) * 65536.0)), 0), 65535)], dtype=jnp.int32)

    # Generation-aware VMEM budgeting (128 MiB on v5e/v6e, 64 MiB on v7x).
    vmem_cap = _vmem_capacity_bytes()
    vmem_limit = min((vmem_cap * 3) // 4, vmem_cap - (8 << 20))
    tr, tc = _choose_tiles(n_rows, width, itemsize, vmem_limit - (4 << 20))
    grid = (pl.cdiv(n_rows, tr), pl.cdiv(width, tc))

    kernel = functools.partial(_dropword_kernel, group=group, hidden=H)
    out = pl.pallas_call(
        kernel,
        out_shape=jax.ShapeDtypeStruct((n_rows, width), x.dtype),
        grid_spec=pltpu.PrefetchScalarGridSpec(
            num_scalar_prefetch=1,            # threshold in SMEM; no recompile per p
            grid=grid,
            in_specs=[
                pl.BlockSpec((tr, group), lambda i, j, thr: (i, 0)),  # token bits
                pl.BlockSpec((tr, tc), lambda i, j, thr: (i, j)),     # x tile
            ],
            out_specs=pl.BlockSpec((tr, tc), lambda i, j, thr: (i, j)),
        ),
        compiler_params=pltpu.CompilerParams(
            dimension_semantics=("parallel", "parallel"),  # all tiles independent
            vmem_limit_bytes=vmem_limit,
        ),
    )(threshold, bits, x2)
    return out.reshape(B, S, H)


if __name__ == "__main__":
    key = jax.random.PRNGKey(0)
    B, S, H = 2, 8, 32
    x = jax.random.normal(key, (B, S, H), dtype=jnp.float32)
    p = 0.5

    # Training path: token-level dropout mask applied.
    y_train = jax.block_until_ready(dropword(x, p=p, seed=1234, training=True))
    assert y_train.shape == x.shape and y_train.dtype == x.dtype
    # Every (b, s) token row is either exactly x[b, s, :] or exactly zero.
    kept = jnp.all(y_train == x, axis=-1)
    dropped = jnp.all(y_train == 0.0, axis=-1)
    assert bool(jnp.all(kept | dropped)), "mask is not constant across hidden dim"

    # Eval path: identity.
    y_eval = jax.block_until_ready(dropword(x, p=p, seed=1234, training=False))
    assert bool(jnp.all(y_eval == x))

    print("KERNEL_OK")
</pallas_src>

<mosaic_0001>
module attributes {stable_mosaic.version = 11 : i64} {
  func.func @_dropword_kernel(%arg0: i32, %arg1: i32, %arg2: memref<1xi32, #tpu.memory_space<smem>>, %arg3: memref<4x4xi16, #tpu.memory_space<vmem>>, %arg4: memref<4x128xf32, #tpu.memory_space<vmem>>, %arg5: memref<4x128xf32, #tpu.memory_space<vmem>>) attributes {dimension_semantics = [#tpu.dimension_semantics<parallel>, #tpu.dimension_semantics<parallel>], iteration_bounds = array<i64: 1, 1>, scalar_prefetch = 1 : i64, scratch_operands = 0 : i64, tpu.core_type = #tpu.core_type<tc>, window_params = [{transform_indices = @transform_0, window_bounds = array<i64: 4, 4>}, {transform_indices = @transform_1, window_bounds = array<i64: 4, 128>}, {transform_indices = @transform_2, window_bounds = array<i64: 4, 128>}]} {
    %c0 = arith.constant 0 : index
    %0 = memref.load %arg2[%c0] : memref<1xi32, #tpu.memory_space<smem>>
    %c0_0 = arith.constant 0 : index
    %c0_1 = arith.constant 0 : index
    %1 = vector.load %arg3[%c0_0, %c0_1] : memref<4x4xi16, #tpu.memory_space<vmem>>, vector<4x4xi16>
    %2 = arith.extui %1 : vector<4x4xi16> to vector<4x4xi32>
    %3 = vector.broadcast %0 : i32 to vector<4x4xi32>
    %4 = arith.cmpi sge, %2, %3 : vector<4x4xi32>
    %5 = arith.extui %4 : vector<4x4xi1> to vector<4x4xi32>
    %6 = arith.sitofp %5 : vector<4x4xi32> to vector<4x4xf32>
    %7 = tpu.iota {dimensions = array<i32: 1>} : vector<4x128xi32>
    %8 = vector.extract_strided_slice %6 {offsets = [0, 3], sizes = [4, 1], strides = [1, 1]} : vector<4x4xf32> to vector<4x1xf32>
    %9 = vector.shape_cast %8 : vector<4x1xf32> to vector<4x1xf32>
    %10 = vector.broadcast %9 : vector<4x1xf32> to vector<4x128xf32>
    %c96_i32 = arith.constant 96 : i32
    %11 = vector.broadcast %c96_i32 : i32 to vector<4x128xi32>
    %12 = arith.cmpi slt, %7, %11 : vector<4x128xi32>
    %13 = vector.extract_strided_slice %6 {offsets = [0, 2], sizes = [4, 1], strides = [1, 1]} : vector<4x4xf32> to vector<4x1xf32>
    %14 = vector.shape_cast %13 : vector<4x1xf32> to vector<4x1xf32>
    %15 = vector.broadcast %14 : vector<4x1xf32> to vector<4x128xf32>
    %16 = arith.select %12, %15, %10 : vector<4x128xi1>, vector<4x128xf32>
    %c64_i32 = arith.constant 64 : i32
    %17 = vector.broadcast %c64_i32 : i32 to vector<4x128xi32>
    %18 = arith.cmpi slt, %7, %17 : vector<4x128xi32>
    %19 = vector.extract_strided_slice %6 {offsets = [0, 1], sizes = [4, 1], strides = [1, 1]} : vector<4x4xf32> to vector<4x1xf32>
    %20 = vector.shape_cast %19 : vector<4x1xf32> to vector<4x1xf32>
    %21 = vector.broadcast %20 : vector<4x1xf32> to vector<4x128xf32>
    %22 = arith.select %18, %21, %16 : vector<4x128xi1>, vector<4x128xf32>
    %c32_i32 = arith.constant 32 : i32
    %23 = vector.broadcast %c32_i32 : i32 to vector<4x128xi32>
    %24 = arith.cmpi slt, %7, %23 : vector<4x128xi32>
    %25 = vector.extract_strided_slice %6 {offsets = [0, 0], sizes = [4, 1], strides = [1, 1]} : vector<4x4xf32> to vector<4x1xf32>
    %26 = vector.shape_cast %25 : vector<4x1xf32> to vector<4x1xf32>
    %27 = vector.broadcast %26 : vector<4x1xf32> to vector<4x128xf32>
    %28 = arith.select %24, %27, %22 : vector<4x128xi1>, vector<4x128xf32>
    %c0_2 = arith.constant 0 : index
    %c0_3 = arith.constant 0 : index
    %29 = vector.load %arg4[%c0_2, %c0_3] : memref<4x128xf32, #tpu.memory_space<vmem>>, vector<4x128xf32>
    %30 = arith.mulf %29, %28 : vector<4x128xf32>
    %c0_4 = arith.constant 0 : index
    %c0_5 = arith.constant 0 : index
    %31 = vector.load %arg5[%c0_4, %c0_5] : memref<4x128xf32, #tpu.memory_space<vmem>>, vector<4x128xf32>
    tpu.vector_store %arg5[%c0_4, %c0_5], %30 {strides = array<i32>} : memref<4x128xf32, #tpu.memory_space<vmem>>, vector<4x128xf32>,
    return
  }
  func.func @transform_0(%arg0: i32, %arg1: i32, %arg2: memref<1xi32, #tpu.memory_space<smem>>) -> (i32, i32) {
    %c0_i32 = arith.constant 0 : i32
    %c0_i32_0 = arith.constant 0 : i32
    return %arg0, %c0_i32 : i32, i32
  }
  func.func @transform_1(%arg0: i32, %arg1: i32, %arg2: memref<1xi32, #tpu.memory_space<smem>>) -> (i32, i32) {
    %c0_i32 = arith.constant 0 : i32
    return %arg0, %arg1 : i32, i32
  }
  func.func @transform_2(%arg0: i32, %arg1: i32, %arg2: memref<1xi32, #tpu.memory_space<smem>>) -> (i32, i32) {
    %c0_i32 = arith.constant 0 : i32
    return %arg0, %arg1 : i32, i32
  }
}

</mosaic_0001>

<llo_original>
// kernel: tpu_custom_call.1
$region0: #{tpu_custom_call.1}
  #allocation0 [shape = 'u32[]', space=smem, size = 0x4, offset = 0x4, fixed_abs, tag = 'smem constant byte address 0x4 - core index']
  #allocation1 [shape = 'u32[72,128]{1,0:T(1,128)}', space=vmem, size = 0x9000, scoped, tag = 'internal scratch']
  #allocation2 [shape = 's32[1]{0}', space=sflag, size = 0x4, scoped, tag = 'scoped memory for tpu_custom_call.1']
  #allocation3 [shape = 's32[1]{0:T(128)S(6)}', space=smem, size = 0x200, scoped, tag = 'prefetched SMEM operand 0']
  %s0 = inlined_call_operand.<no memory space> [shape: s32[1], index: 0, kind: input, shape index: {}]
  %s1 = inlined_call_operand.vmem [shape: u16[4,4], index: 1, kind: input, shape index: {}]
  %s2 = inlined_call_operand.hbm [shape: f32[4,128], index: 2, kind: input, shape index: {}]
  %s3 = inlined_call_operand.hbm [shape: f32[4,128], index: 3, kind: output, shape index: {}]
  %s4 = sld [smem:[#allocation0]]
  $region22: #{tpu_custom_call.1} parent=0
    _
  %s6 = ssub.s32 1, %s4
  %s7 = scalar_select 0, %s6, %s4
  %8 = sst [smem:[#allocation3]] %s0
  $region1: #{tpu_custom_call.1} parent=0
    #allocation4 [shape = 'u8[2048]{0}', space=vmem, size = 0x800, scoped, tag = 'input window, operand 2, single buffered']
    #allocation5 [shape = 's32[1]{0}', space=sflag, size = 0x4, scoped, tag = 'scoped memory for tpu_custom_call.1']
    #allocation6 [shape = 's32[1]{0}', space=sflag, size = 0x4, scoped, tag = 'scoped memory for tpu_custom_call.1']
    #allocation7 [shape = 'u8[2048]{0}', space=vmem, size = 0x800, scoped, tag = 'output window, operand 0, single buffered']
    %9 = vsyncpa [#allocation5], 0
    %10 = vsyncpa [#allocation6], 0
    // Predicated region
    $region2: #{tpu_custom_call.1} parent=1 // pred_check
      _
    $region3: #{tpu_custom_call.1} parent=1 // pred_check_branch
      %12 = sbr.rel (0) target = $region5
    $region4: #{tpu_custom_call.1} parent=1 // pred_region
      _
    $region5: #{tpu_custom_call.1} parent=1 // pred_fallthru
      _
    // Predicated region
    $region6: #{tpu_custom_call.1} parent=1 // pred_check
      _
    $region7: #{tpu_custom_call.1} parent=1 // pred_check_branch
      %14 = sbr.rel (0) target = $region9
    $region8: #{tpu_custom_call.1} parent=1 // pred_region
      %16 = vsyncadd [#allocation5], 0
      %s18 = sshll.u32 %s2, 4
      %s19 = int_to_ptr.hbm [resolvable:$true] %s18
      %s20 = sshll.u32 [#allocation4], 4
      %s21 = int_to_ptr.vmem [resolvable:$true] %s20
      %23 = dma.hbm_to_vmem [thread:$0]  %s19, 64, %s21, [#allocation5]
    $region9: #{tpu_custom_call.1} parent=1 // pred_fallthru
      _
    // Predicated region
    $region10: #{tpu_custom_call.1} parent=1 // pred_check
      _
    $region11: #{tpu_custom_call.1} parent=1 // pred_check_branch
      %25 = sbr.rel (0) target = $region13
    $region12: #{tpu_custom_call.1} parent=1 // pred_region
      %27 = dma.done [#allocation5], 64
    $region13: #{tpu_custom_call.1} parent=1 // pred_fallthru
      _
    %s28 = sld [smem:[#allocation3]]
    %v29 = vld [vmem:[%s1] sm:$0x3]
    %v30 = vunpack.c.l.b16 %v29
    %v31 = vand.u32 %v30, 65535
    %v32 = vstv %s28
    %vm33 = vcmp.ge.s32.totalorder %v31, %v32
    %v34 = vsel %vm33, 1, 0
    %v35 = vcvt.s32.f32 %v34
    %v36 = vlaneseq
    %v37 = vand.u32 %v36, 127
    %39 = vset.pattern.permute.xlu0 3
    %40 = vperm.xlu0 %39, %v35
    %v41 = vpop.permute.xlu0 %40
    %v44 = vunpack.c.l.s4 839922192
    %v45 = vunpack.c.0.s8 %v44
    %v46 = vperm.slane %v41, %v45
    %vm47 = vcmp.lt.s32.totalorder %v37, 96
    %48 = vset.pattern.permute.xlu0 2
    %49 = vperm.xlu0 %48, %v35
    %v50 = vpop.permute.xlu0 %49
    %v53 = vunpack.c.l.s4 839922192
    %v54 = vunpack.c.0.s8 %v53
    %v55 = vperm.slane %v50, %v54
    %v56 = vsel %vm47, %v55, %v46
    %vm57 = vcmp.lt.s32.totalorder %v37, 64
    %58 = vset.pattern.permute.xlu0 1
    %59 = vperm.xlu0 %58, %v35
    %v60 = vpop.permute.xlu0 %59
    %v63 = vunpack.c.l.s4 839922192
    %v64 = vunpack.c.0.s8 %v63
    %v65 = vperm.slane %v60, %v64
    %v66 = vsel %vm57, %v65, %v56
    %vm67 = vcmp.lt.s32.totalorder %v37, 32
    %68 = vset.pattern.permute.xlu0 0
    %69 = vperm.xlu0 %68, %v35
    %v70 = vpop.permute.xlu0 %69
    %v73 = vunpack.c.l.s4 839922192
    %v74 = vunpack.c.0.s8 %v73
    %v75 = vperm.slane %v70, %v74
    %v76 = vsel %vm67, %v75, %v66
    %v77 = vld [vmem:[#allocation4] sm:$0xf]
    %v78 = vmul.f32 %v77, %v76
    %79 = vst [vmem:[#allocation7] sm:$0xf] %v78
    // Predicated region
    $region14: #{tpu_custom_call.1} parent=1 // pred_check
      _
    $region15: #{tpu_custom_call.1} parent=1 // pred_check_branch
      %81 = sbr.rel (0) target = $region17
    $region16: #{tpu_custom_call.1} parent=1 // pred_region
      %83 = vsyncadd [#allocation6], 0
      %s85 = sshll.u32 [#allocation7], 4
      %s86 = int_to_ptr.vmem [resolvable:$true] %s85
      %s87 = sshll.u32 %s3, 4
      %s88 = int_to_ptr.hbm [resolvable:$true] %s87
      %90 = dma.vmem_to_hbm [thread:$0]  %s86, 64, %s88, [#allocation6]
    $region17: #{tpu_custom_call.1} parent=1 // pred_fallthru
      _
    // Predicated region
    $region18: #{tpu_custom_call.1} parent=1 // pred_check
      _
    $region19: #{tpu_custom_call.1} parent=1 // pred_check_branch
      %92 = sbr.rel (0) target = $region21
    $region20: #{tpu_custom_call.1} parent=1 // pred_region
      %94 = dma.done [#allocation6], 64
    $region21: #{tpu_custom_call.1} parent=1 // pred_fallthru
      _
    %95 = vsyncpa [#allocation5], 1
    %96 = vsyncpa [#allocation6], 1

</llo_original>
